<compile_context>
chip_gen: v6e
topology: v6e:2x2x1
jax: 0.10.0
libtpu: 0.0.40
codegen_flags: <defaults>
</compile_context>

<pallas_src>
import functools

import jax
import jax.numpy as jnp
from jax.experimental import pallas as pl
from jax.experimental.pallas import tpu as pltpu


def _round_up(n, m):
    return ((n + m - 1) // m) * m


def _proj_vecfield_kernel(xT_ref, w0T_ref, b0T_ref, whT_ref, bhT_ref,
                          woutT_ref, boutT_ref, oT_ref, *, n_hidden):
    # xT tile: (D, tm) -- batch on lanes (lane-dense), features on sublanes.
    xT = xT_ref[...].astype(jnp.float32)

    # Input layer + tanh:  h^T = tanh(W0^T @ x^T + b0^T)  -> (H, tm)
    h = jnp.tanh(
        jnp.dot(w0T_ref[...], xT, preferred_element_type=jnp.float32) + b0T_ref[...]
    )

    # Hidden layers (fully unrolled; fori_loop keeps live ranges bounded if n_hidden grows).
    def body(l, h):
        return jnp.tanh(
            jnp.dot(whT_ref[l], h, preferred_element_type=jnp.float32) + bhT_ref[l]
        )
    h = jax.lax.fori_loop(0, n_hidden, body, h, unroll=True)

    # Output layer (no activation):  v^T = Wout^T @ h^T + bout^T  -> (D, tm)
    v = jnp.dot(woutT_ref[...], h, preferred_element_type=jnp.float32) + boutT_ref[...]

    # Sphere manifold proju: out = v - <x, v> x   (per batch column).
    inner = jnp.sum(xT * v, axis=0, keepdims=True)          # (1, tm)
    oT_ref[...] = (v - inner * xT).astype(oT_ref.dtype)


def proj_vecfield(x, params, *, n_hidden, tm=512):
    """x: (B, D) float32.  params: dict of MLP weights.  Returns (B, D)."""
    B, D = x.shape
    w0, b0, wh, bh, wout, bout = (
        params["w0"], params["b0"], params["wh"], params["bh"],
        params["wout"], params["bout"],
    )
    H = w0.shape[1]
    assert wout.shape[1] == D, "proju requires out_dim == in_dim"

    # Batch tile: multiple of 128 so batch fills the lane axis; pad B up to a multiple.
    tm = _round_up(max(128, min(int(tm), _round_up(B, 128))), 128)
    Bp = _round_up(B, tm)
    if Bp != B:
        x = jnp.concatenate([x, jnp.zeros((Bp - B, D), x.dtype)], axis=0)

    # Layout plumbing (cheap wrapper-side transposes): batch on lanes inside the kernel.
    xT = x.T                                   # (D, Bp)
    w0T = w0.T                                 # (H, D)
    b0T = b0.T                                 # (H, 1)
    whT = jnp.swapaxes(wh, -1, -2)             # (nh, H, H)
    bhT = jnp.swapaxes(bh, -1, -2)             # (nh, H, 1)
    woutT = wout.T                             # (D, H)
    boutT = bout.T                             # (D, 1)

    kernel = functools.partial(_proj_vecfield_kernel, n_hidden=n_hidden)

    # Weights are constant across the grid: keep them whole-array resident in VMEM
    # (single buffer, no per-step revolving DMA bookkeeping).
    resident = lambda: pl.BlockSpec(memory_space=pltpu.MemorySpace.VMEM)

    outT = pl.pallas_call(
        kernel,
        out_shape=jax.ShapeDtypeStruct((D, Bp), x.dtype),
        grid_spec=pltpu.PrefetchScalarGridSpec(
            num_scalar_prefetch=0,
            grid=(Bp // tm,),
            in_specs=[
                pl.BlockSpec((D, tm), lambda i: (0, i)),   # x^T tile (lane-dense)
                resident(),                                 # w0^T
                resident(),                                 # b0^T
                resident(),                                 # wh^T stack
                resident(),                                 # bh^T stack
                resident(),                                 # wout^T
                resident(),                                 # bout^T
            ],
            out_specs=pl.BlockSpec((D, tm), lambda i: (0, i)),
        ),
        compiler_params=pltpu.CompilerParams(
            dimension_semantics=("parallel",)),
    )(xT, w0T, b0T, whT, bhT, woutT, boutT)

    return outT[:, :B].T


def init_params(key, in_dim, hidden_dim, out_dim, n_hidden):
    ks = jax.random.split(key, 6)
    s = 0.1
    nh = max(n_hidden, 1)
    return {
        "w0":   s * jax.random.normal(ks[0], (in_dim, hidden_dim), jnp.float32),
        "b0":   s * jax.random.normal(ks[1], (1, hidden_dim), jnp.float32),
        "wh":   s * jax.random.normal(ks[2], (nh, hidden_dim, hidden_dim), jnp.float32),
        "bh":   s * jax.random.normal(ks[3], (nh, 1, hidden_dim), jnp.float32),
        "wout": s * jax.random.normal(ks[4], (hidden_dim, out_dim), jnp.float32),
        "bout": s * jax.random.normal(ks[5], (1, out_dim), jnp.float32),
    }


def reference(x, params, n_hidden):
    h = jnp.tanh(x @ params["w0"] + params["b0"])
    for l in range(n_hidden):
        h = jnp.tanh(h @ params["wh"][l] + params["bh"][l])
    v = h @ params["wout"] + params["bout"]
    return v - jnp.sum(x * v, axis=-1, keepdims=True) * x


if __name__ == "__main__":
    in_dim = out_dim = 8
    hidden_dim = 32
    n_hidden = 2
    batch = 1000    # pads to 1024 -> 2 grid steps at tm=512 (exercises ragged tail + both v7x TCs)

    key = jax.random.PRNGKey(0)
    kx, kp = jax.random.split(key)

    # Points (nominally on the sphere manifold) — normalize rows of random input.
    x = jax.random.normal(kx, (batch, in_dim), jnp.float32)
    x = x / jnp.linalg.norm(x, axis=-1, keepdims=True)

    params = init_params(kp, in_dim, hidden_dim, out_dim, n_hidden)

    out = proj_vecfield(x, params, n_hidden=n_hidden, tm=512)
    out = jax.block_until_ready(out)

    ref = reference(x, params, n_hidden)
    assert out.shape == (batch, out_dim)
    assert jnp.allclose(out, ref, atol=2e-5, rtol=2e-5)
    # tangency check: <x, out> ≈ 0 rowwise
    assert jnp.max(jnp.abs(jnp.sum(x * out, axis=-1))) < 1e-4

    print("KERNEL_OK")
</pallas_src>

<mosaic_0001>
module attributes {stable_mosaic.version = 11 : i64} {
  func.func @_proj_vecfield_kernel(%arg0: i32, %arg1: memref<8x512xf32, #tpu.memory_space<vmem>>, %arg2: memref<32x8xf32, #tpu.memory_space<vmem>>, %arg3: memref<32x1xf32, #tpu.memory_space<vmem>>, %arg4: memref<2x32x32xf32, #tpu.memory_space<vmem>>, %arg5: memref<2x32x1xf32, #tpu.memory_space<vmem>>, %arg6: memref<8x32xf32, #tpu.memory_space<vmem>>, %arg7: memref<8x1xf32, #tpu.memory_space<vmem>>, %arg8: memref<8x512xf32, #tpu.memory_space<vmem>>) attributes {dimension_semantics = [#tpu.dimension_semantics<parallel>], iteration_bounds = array<i64: 2>, scalar_prefetch = 0 : i64, scratch_operands = 0 : i64, tpu.core_type = #tpu.core_type<tc>, window_params = [{transform_indices = @transform_0, window_bounds = array<i64: 8, 512>}, {pipeline_mode = #tpu.pipeline_mode<synchronous>, transform_indices = @transform_1, window_bounds = array<i64: 32, 8>}, {pipeline_mode = #tpu.pipeline_mode<synchronous>, transform_indices = @transform_2, window_bounds = array<i64: 32, 1>}, {pipeline_mode = #tpu.pipeline_mode<synchronous>, transform_indices = @transform_3, window_bounds = array<i64: 2, 32, 32>}, {pipeline_mode = #tpu.pipeline_mode<synchronous>, transform_indices = @transform_4, window_bounds = array<i64: 2, 32, 1>}, {pipeline_mode = #tpu.pipeline_mode<synchronous>, transform_indices = @transform_5, window_bounds = array<i64: 8, 32>}, {pipeline_mode = #tpu.pipeline_mode<synchronous>, transform_indices = @transform_6, window_bounds = array<i64: 8, 1>}, {transform_indices = @transform_7, window_bounds = array<i64: 8, 512>}]} {
    %c0 = arith.constant 0 : index
    %c0_0 = arith.constant 0 : index
    %0 = vector.load %arg1[%c0, %c0_0] : memref<8x512xf32, #tpu.memory_space<vmem>>, vector<8x512xf32>
    %c0_1 = arith.constant 0 : index
    %c0_2 = arith.constant 0 : index
    %1 = vector.load %arg2[%c0_1, %c0_2] : memref<32x8xf32, #tpu.memory_space<vmem>>, vector<32x8xf32>
    %cst = arith.constant dense<0.000000e+00> : vector<32x512xf32>
    %2 = tpu.matmul %1, %0, %cst {dimension_numbers = #tpu.dot_dimension_numbers<[1], [0], [0], [1], [0, 0, 1, 1], [], []>} : vector<32x8xf32>, vector<8x512xf32>, vector<32x512xf32> -> vector<32x512xf32>
    %c0_3 = arith.constant 0 : index
    %c0_4 = arith.constant 0 : index
    %3 = vector.load %arg3[%c0_3, %c0_4] : memref<32x1xf32, #tpu.memory_space<vmem>>, vector<32x1xf32>
    %4 = vector.broadcast %3 : vector<32x1xf32> to vector<32x512xf32>
    %5 = arith.addf %2, %4 : vector<32x512xf32>
    %6 = math.tanh %5 : vector<32x512xf32>
    %c0_i32 = arith.constant 0 : i32
    %7 = arith.index_cast %c0_i32 : i32 to index
    %c0_5 = arith.constant 0 : index
    %c0_6 = arith.constant 0 : index
    %8 = vector.load %arg4[%7, %c0_5, %c0_6] : memref<2x32x32xf32, #tpu.memory_space<vmem>>, vector<1x32x32xf32>
    %9 = vector.shape_cast %8 : vector<1x32x32xf32> to vector<32x32xf32>
    %cst_7 = arith.constant dense<0.000000e+00> : vector<32x512xf32>
    %10 = tpu.matmul %9, %6, %cst_7 {dimension_numbers = #tpu.dot_dimension_numbers<[1], [0], [0], [1], [0, 0, 1, 1], [], []>} : vector<32x32xf32>, vector<32x512xf32>, vector<32x512xf32> -> vector<32x512xf32>
    %11 = arith.index_cast %c0_i32 : i32 to index
    %c0_8 = arith.constant 0 : index
    %c0_9 = arith.constant 0 : index
    %12 = vector.load %arg5[%11, %c0_8, %c0_9] : memref<2x32x1xf32, #tpu.memory_space<vmem>>, vector<1x32x1xf32>
    %13 = vector.shape_cast %12 : vector<1x32x1xf32> to vector<32x1xf32>
    %14 = vector.broadcast %13 : vector<32x1xf32> to vector<32x512xf32>
    %15 = arith.addf %10, %14 : vector<32x512xf32>
    %16 = math.tanh %15 : vector<32x512xf32>
    %c1_i32 = arith.constant 1 : i32
    %17 = arith.index_cast %c1_i32 : i32 to index
    %c0_10 = arith.constant 0 : index
    %c0_11 = arith.constant 0 : index
    %18 = vector.load %arg4[%17, %c0_10, %c0_11] : memref<2x32x32xf32, #tpu.memory_space<vmem>>, vector<1x32x32xf32>
    %19 = vector.shape_cast %18 : vector<1x32x32xf32> to vector<32x32xf32>
    %cst_12 = arith.constant dense<0.000000e+00> : vector<32x512xf32>
    %20 = tpu.matmul %19, %16, %cst_12 {dimension_numbers = #tpu.dot_dimension_numbers<[1], [0], [0], [1], [0, 0, 1, 1], [], []>} : vector<32x32xf32>, vector<32x512xf32>, vector<32x512xf32> -> vector<32x512xf32>
    %21 = arith.index_cast %c1_i32 : i32 to index
    %c0_13 = arith.constant 0 : index
    %c0_14 = arith.constant 0 : index
    %22 = vector.load %arg5[%21, %c0_13, %c0_14] : memref<2x32x1xf32, #tpu.memory_space<vmem>>, vector<1x32x1xf32>
    %23 = vector.shape_cast %22 : vector<1x32x1xf32> to vector<32x1xf32>
    %24 = vector.broadcast %23 : vector<32x1xf32> to vector<32x512xf32>
    %25 = arith.addf %20, %24 : vector<32x512xf32>
    %26 = math.tanh %25 : vector<32x512xf32>
    %c2_i32 = arith.constant 2 : i32
    %c0_15 = arith.constant 0 : index
    %c0_16 = arith.constant 0 : index
    %27 = vector.load %arg6[%c0_15, %c0_16] : memref<8x32xf32, #tpu.memory_space<vmem>>, vector<8x32xf32>
    %cst_17 = arith.constant dense<0.000000e+00> : vector<8x512xf32>
    %28 = tpu.matmul %27, %26, %cst_17 {dimension_numbers = #tpu.dot_dimension_numbers<[1], [0], [0], [1], [0, 0, 1, 1], [], []>} : vector<8x32xf32>, vector<32x512xf32>, vector<8x512xf32> -> vector<8x512xf32>
    %c0_18 = arith.constant 0 : index
    %c0_19 = arith.constant 0 : index
    %29 = vector.load %arg7[%c0_18, %c0_19] : memref<8x1xf32, #tpu.memory_space<vmem>>, vector<8x1xf32>
    %30 = vector.broadcast %29 : vector<8x1xf32> to vector<8x512xf32>
    %31 = arith.addf %28, %30 : vector<8x512xf32>
    %32 = arith.mulf %0, %31 : vector<8x512xf32>
    %cst_20 = arith.constant dense<0.000000e+00> : vector<512xf32>
    %33 = vector.multi_reduction <add>, %32, %cst_20 [0] : vector<8x512xf32> to vector<512xf32>
    %34 = vector.shape_cast %33 : vector<512xf32> to vector<1x512xf32>
    %35 = vector.broadcast %34 : vector<1x512xf32> to vector<8x512xf32>
    %36 = arith.mulf %35, %0 : vector<8x512xf32>
    %37 = arith.subf %31, %36 : vector<8x512xf32>
    %c0_21 = arith.constant 0 : index
    %c0_22 = arith.constant 0 : index
    %38 = vector.load %arg8[%c0_21, %c0_22] : memref<8x512xf32, #tpu.memory_space<vmem>>, vector<8x512xf32>
    tpu.vector_store %arg8[%c0_21, %c0_22], %37 {strides = array<i32>} : memref<8x512xf32, #tpu.memory_space<vmem>>, vector<8x512xf32>,
    return
  }
  func.func @transform_0(%arg0: i32) -> (i32, i32) {
    %c0_i32 = arith.constant 0 : i32
    %c0_i32_0 = arith.constant 0 : i32
    return %c0_i32, %arg0 : i32, i32
  }
  func.func @transform_1(%arg0: i32) -> (i32, i32) {
    %c0_i32 = arith.constant 0 : i32
    %c0_i32_0 = arith.constant 0 : i32
    %c0_i32_1 = arith.constant 0 : i32
    return %c0_i32, %c0_i32_0 : i32, i32
  }
  func.func @transform_2(%arg0: i32) -> (i32, i32) {
    %c0_i32 = arith.constant 0 : i32
    %c0_i32_0 = arith.constant 0 : i32
    %c0_i32_1 = arith.constant 0 : i32
    return %c0_i32, %c0_i32_0 : i32, i32
  }
  func.func @transform_3(%arg0: i32) -> (i32, i32, i32) {
    %c0_i32 = arith.constant 0 : i32
    %c0_i32_0 = arith.constant 0 : i32
    %c0_i32_1 = arith.constant 0 : i32
    %c0_i32_2 = arith.constant 0 : i32
    return %c0_i32, %c0_i32_0, %c0_i32_1 : i32, i32, i32
  }
  func.func @transform_4(%arg0: i32) -> (i32, i32, i32) {
    %c0_i32 = arith.constant 0 : i32
    %c0_i32_0 = arith.constant 0 : i32
    %c0_i32_1 = arith.constant 0 : i32
    %c0_i32_2 = arith.constant 0 : i32
    return %c0_i32, %c0_i32_0, %c0_i32_1 : i32, i32, i32
  }
  func.func @transform_5(%arg0: i32) -> (i32, i32) {
    %c0_i32 = arith.constant 0 : i32
    %c0_i32_0 = arith.constant 0 : i32
    %c0_i32_1 = arith.constant 0 : i32
    return %c0_i32, %c0_i32_0 : i32, i32
  }
  func.func @transform_6(%arg0: i32) -> (i32, i32) {
    %c0_i32 = arith.constant 0 : i32
    %c0_i32_0 = arith.constant 0 : i32
    %c0_i32_1 = arith.constant 0 : i32
    return %c0_i32, %c0_i32_0 : i32, i32
  }
  func.func @transform_7(%arg0: i32) -> (i32, i32) {
    %c0_i32 = arith.constant 0 : i32
    %c0_i32_0 = arith.constant 0 : i32
    return %c0_i32, %arg0 : i32, i32
  }
}

</mosaic_0001>

<llo_original>
// kernel: tpu_custom_call.1
$region0: #{tpu_custom_call.1}
  #allocation0 [shape = 'u32[]', space=smem, size = 0x4, offset = 0x4, fixed_abs, tag = 'smem constant byte address 0x4 - core index']
  #allocation1 [shape = 'u32[144,128]{1,0:T(1,128)}', space=vmem, size = 0x12000, scoped, tag = 'internal scratch']
  %s0 = inlined_call_operand.vmem [shape: f32[8,1024], index: 0, kind: input, shape index: {}]
  %s1 = inlined_call_operand.vmem [shape: f32[32,8], index: 1, kind: input, shape index: {}]
  %s2 = inlined_call_operand.vmem [shape: f32[32,1], index: 2, kind: input, shape index: {}]
  %s3 = inlined_call_operand.vmem [shape: f32[2,32,32], index: 3, kind: input, shape index: {}]
  %s4 = inlined_call_operand.vmem [shape: f32[2,32,1], index: 4, kind: input, shape index: {}]
  %s5 = inlined_call_operand.vmem [shape: f32[8,32], index: 5, kind: input, shape index: {}]
  %s6 = inlined_call_operand.vmem [shape: f32[8,1], index: 6, kind: input, shape index: {}]
  %s7 = inlined_call_operand.hbm [shape: f32[8,1024], index: 7, kind: output, shape index: {}]
  %s8 = sld [smem:[#allocation0]]
  $region61: #{tpu_custom_call.1} parent=0
    _
  %s10 = ssub.s32 1, %s8
  %s11 = scalar_select 0, %s10, %s8
  $region1: #{tpu_custom_call.1} parent=0
    #allocation2 [shape = 'u8[32768]{0}', space=vmem, size = 0x8000, scoped, tag = 'output window, operand 0']
    #allocation3 [shape = 's32[2]{0}', space=sflag, size = 0x8, scoped, tag = 'scoped memory for tpu_custom_call.1']
    %12 = vsyncpa [#allocation3], 0
    %s13 = scalar_lea.sflag [#allocation3], 1
    %14 = vsyncpa %s13, 0
    loop: start=0, step=1, limit=4
    $region2: #{tpu_custom_call.1} parent=1 // loop_pre_header
      _
    $region3: #{tpu_custom_call.1} parent=1 // loop_header
      %s16 = sphi 0, %s20
      %p17 = scmp.ge.s32.totalorder %s16, 4
      %s26 = sphi 0, %s28
      %s29 = sphi 0, %s26
      %s30 = sphi 0, %s29
      %s46 = sphi 0, %s30
      %s50 = sphi 0, %s50
      %s52 = sphi 0, %s50
      %s53 = sphi 0, %s52
      %s67 = sphi 0, %s53
      %s71 = sphi 0, %s71
      %s73 = sphi 0, %s71
      %s74 = sphi 0, %s73
      %s88 = sphi 0, %s74
      %s92 = sphi 0, %s92
      %s94 = sphi 0, %s92
      %s95 = sphi 0, %s94
      %s109 = sphi 0, %s95
      %s113 = sphi 0, %s113
      %s115 = sphi 0, %s113
      %s116 = sphi 0, %s115
      %s130 = sphi 0, %s116
      %s134 = sphi 0, %s134
      %s136 = sphi 0, %s134
      %s137 = sphi 0, %s136
      %s151 = sphi 0, %s137
      %s155 = sphi 0, %s155
      %s157 = sphi 0, %s155
      %s158 = sphi 0, %s157
      %s172 = sphi 0, %s158
      %s178 = sphi 0, %s180
      %s181 = sphi 0, %s178
      %s182 = sphi 0, %s181
      %s198 = sphi 0, %s182
    $region4: #{tpu_custom_call.1} parent=1 // loop_header_branch
      %19 = sbr.rel (%p17) target = $region8
    $region5: #{tpu_custom_call.1} parent=1 // loop_body
      %s21 = ssub.s32 %s16, 1
      %s22 = ssub.s32 %s16, 2
      %s23 = sadd.s32 %s16, 1
      %s24 = ssub.s32 %s16, %s23
      %p25 = scmp.eq.s32.totalorder %s24, 0
      %s27 = sadd.s32 %s26, 1
      %s28 = scalar_select %p25, %s26, %s27
      %p31 = pneg %p25
      %p32 = scmp.eq.s32.totalorder %s16, 1
      %p33 = por %p31, %p32
      %p34 = scmp.ne.s32.totalorder %s26, %s29
      %p35 = scmp.eq.s32.totalorder %s16, 0
      %p36 = por %p34, %p35
      %p37 = scmp.ne.s32.totalorder %s26, %s29
      %p38 = scmp.eq.s32.totalorder %s21, 1
      %p39 = por %p37, %p38
      %p40 = scmp.ne.s32.totalorder %s29, %s30
      %p41 = scmp.eq.s32.totalorder %s21, 0
      %p42 = por %p40, %p41
      %p43 = scmp.ne.s32.totalorder %s29, %s30
      %p44 = scmp.eq.s32.totalorder %s22, 1
      %p45 = por %p43, %p44
      %p47 = scmp.ne.s32.totalorder %s30, %s46
      %p48 = scmp.eq.s32.totalorder %s22, 0
      %p49 = por %p47, %p48
      %s51 = sadd.s32 %s50, 1
      %p54 = scmp.eq.s32.totalorder %s16, 1
      %p55 = scmp.ne.s32.totalorder %s50, %s52
      %p56 = scmp.eq.s32.totalorder %s16, 0
      %p57 = por %p55, %p56
      %p58 = scmp.ne.s32.totalorder %s50, %s52
      %p59 = scmp.eq.s32.totalorder %s21, 1
      %p60 = por %p58, %p59
      %p61 = scmp.ne.s32.totalorder %s52, %s53
      %p62 = scmp.eq.s32.totalorder %s21, 0
      %p63 = por %p61, %p62
      %p64 = scmp.ne.s32.totalorder %s52, %s53
      %p65 = scmp.eq.s32.totalorder %s22, 1
      %p66 = por %p64, %p65
      %p68 = scmp.ne.s32.totalorder %s53, %s67
      %p69 = scmp.eq.s32.totalorder %s22, 0
      %p70 = por %p68, %p69
      %s72 = sadd.s32 %s71, 1
      %p75 = scmp.eq.s32.totalorder %s16, 1
      %p76 = scmp.ne.s32.totalorder %s71, %s73
      %p77 = scmp.eq.s32.totalorder %s16, 0
      %p78 = por %p76, %p77
      %p79 = scmp.ne.s32.totalorder %s71, %s73
      %p80 = scmp.eq.s32.totalorder %s21, 1
      %p81 = por %p79, %p80
      %p82 = scmp.ne.s32.totalorder %s73, %s74
      %p83 = scmp.eq.s32.totalorder %s21, 0
      %p84 = por %p82, %p83
      %p85 = scmp.ne.s32.totalorder %s73, %s74
      %p86 = scmp.eq.s32.totalorder %s22, 1
      %p87 = por %p85, %p86
      %p89 = scmp.ne.s32.totalorder %s74, %s88
      %p90 = scmp.eq.s32.totalorder %s22, 0
      %p91 = por %p89, %p90
      %s93 = sadd.s32 %s92, 1
      %p96 = scmp.eq.s32.totalorder %s16, 1
      %p97 = scmp.ne.s32.totalorder %s92, %s94
      %p98 = scmp.eq.s32.totalorder %s16, 0
      %p99 = por %p97, %p98
      %p100 = scmp.ne.s32.totalorder %s92, %s94
      %p101 = scmp.eq.s32.totalorder %s21, 1
      %p102 = por %p100, %p101
      %p103 = scmp.ne.s32.totalorder %s94, %s95
      %p104 = scmp.eq.s32.totalorder %s21, 0
      %p105 = por %p103, %p104
      %p106 = scmp.ne.s32.totalorder %s94, %s95
      %p107 = scmp.eq.s32.totalorder %s22, 1
      %p108 = por %p106, %p107
      %p110 = scmp.ne.s32.totalorder %s95, %s109
      %p111 = scmp.eq.s32.totalorder %s22, 0
      %p112 = por %p110, %p111
      %s114 = sadd.s32 %s113, 1
      %p117 = scmp.eq.s32.totalorder %s16, 1
      %p118 = scmp.ne.s32.totalorder %s113, %s115
      %p119 = scmp.eq.s32.totalorder %s16, 0
      %p120 = por %p118, %p119
      %p121 = scmp.ne.s32.totalorder %s113, %s115
      %p122 = scmp.eq.s32.totalorder %s21, 1
      %p123 = por %p121, %p122
      %p124 = scmp.ne.s32.totalorder %s115, %s116
      %p125 = scmp.eq.s32.totalorder %s21, 0
      %p126 = por %p124, %p125
      %p127 = scmp.ne.s32.totalorder %s115, %s116
      %p128 = scmp.eq.s32.totalorder %s22, 1
      %p129 = por %p127, %p128
      %p131 = scmp.ne.s32.totalorder %s116, %s130
      %p132 = scmp.eq.s32.totalorder %s22, 0
      %p133 = por %p131, %p132
      %s135 = sadd.s32 %s134, 1
      %p138 = scmp.eq.s32.totalorder %s16, 1
      %p139 = scmp.ne.s32.totalorder %s134, %s136
      %p140 = scmp.eq.s32.totalorder %s16, 0
      %p141 = por %p139, %p140
      %p142 = scmp.ne.s32.totalorder %s134, %s136
      %p143 = scmp.eq.s32.totalorder %s21, 1
      %p144 = por %p142, %p143
      %p145 = scmp.ne.s32.totalorder %s136, %s137
      %p146 = scmp.eq.s32.totalorder %s21, 0
      %p147 = por %p145, %p146
      %p148 = scmp.ne.s32.totalorder %s136, %s137
      %p149 = scmp.eq.s32.totalorder %s22, 1
      %p150 = por %p148, %p149
      %p152 = scmp.ne.s32.totalorder %s137, %s151
      %p153 = scmp.eq.s32.totalorder %s22, 0
      %p154 = por %p152, %p153
      %s156 = sadd.s32 %s155, 1
      %p159 = scmp.eq.s32.totalorder %s16, 1
      %p160 = scmp.ne.s32.totalorder %s155, %s157
      %p161 = scmp.eq.s32.totalorder %s16, 0
      %p162 = por %p160, %p161
      %p163 = scmp.ne.s32.totalorder %s155, %s157
      %p164 = scmp.eq.s32.totalorder %s21, 1
      %p165 = por %p163, %p164
      %p166 = scmp.ne.s32.totalorder %s157, %s158
      %p167 = scmp.eq.s32.totalorder %s21, 0
      %p168 = por %p166, %p167
      %p169 = scmp.ne.s32.totalorder %s157, %s158
      %p170 = scmp.eq.s32.totalorder %s22, 1
      %p171 = por %p169, %p170
      %p173 = scmp.ne.s32.totalorder %s158, %s172
      %p174 = scmp.eq.s32.totalorder %s22, 0
      %p175 = por %p173, %p174
      %s176 = ssub.s32 %s16, %s23
      %p177 = scmp.eq.s32.totalorder %s176, 0
      %s179 = sadd.s32 %s178, 1
      %s180 = scalar_select %p177, %s178, %s179
      %p183 = pneg %p177
      %p184 = scmp.eq.s32.totalorder %s16, 1
      %p185 = por %p183, %p184
      %p186 = scmp.ne.s32.totalorder %s178, %s181
      %p187 = scmp.eq.s32.totalorder %s16, 0
      %p188 = por %p186, %p187
      %p189 = scmp.ne.s32.totalorder %s178, %s181
      %p190 = scmp.eq.s32.totalorder %s21, 1
      %p191 = por %p189, %p190
      %p192 = scmp.ne.s32.totalorder %s181, %s182
      %p193 = scmp.eq.s32.totalorder %s21, 0
      %p194 = por %p192, %p193
      %p195 = scmp.ne.s32.totalorder %s181, %s182
      %p196 = scmp.eq.s32.totalorder %s22, 1
      %p197 = por %p195, %p196
      %p199 = scmp.ne.s32.totalorder %s182, %s198
      %p200 = scmp.eq.s32.totalorder %s22, 0
      %p201 = por %p199, %p200
      %p202 = scmp.le.s32.totalorder 1, %s16
      %p203 = scmp.lt.s32.totalorder %s16, 3
      %p204 = pnand %p202, %p203
      %p205 = pneg %p204
      // Predicated region
      $region9: #{tpu_custom_call.1} parent=5 // pred_check
        _
      $region10: #{tpu_custom_call.1} parent=5 // pred_check_branch
        %207 = sbr.rel (%p204) target = $region12
      $region11: #{tpu_custom_call.1} parent=5 // pred_region
        %s208 = ssub.s32 %s16, 1
        // Predicated region
        $region13: #{tpu_custom_call.1} parent=11 // pred_check
          %p209 = pneg %p63
        $region14: #{tpu_custom_call.1} parent=11 // pred_check_branch
          %211 = sbr.rel (%p209) target = $region16
        $region15: #{tpu_custom_call.1} parent=11 // pred_region
          _
        $region16: #{tpu_custom_call.1} parent=11 // pred_fallthru
          _
        // Predicated region
        $region17: #{tpu_custom_call.1} parent=11 // pred_check
          %p212 = pneg %p84
        $region18: #{tpu_custom_call.1} parent=11 // pred_check_branch
          %214 = sbr.rel (%p212) target = $region20
        $region19: #{tpu_custom_call.1} parent=11 // pred_region
          _
        $region20: #{tpu_custom_call.1} parent=11 // pred_fallthru
          _
        // Predicated region
        $region21: #{tpu_custom_call.1} parent=11 // pred_check
          %p215 = pneg %p105
        $region22: #{tpu_custom_call.1} parent=11 // pred_check_branch
          %217 = sbr.rel (%p215) target = $region24
        $region23: #{tpu_custom_call.1} parent=11 // pred_region
          _
        $region24: #{tpu_custom_call.1} parent=11 // pred_fallthru
          _
        // Predicated region
        $region25: #{tpu_custom_call.1} parent=11 // pred_check
          %p218 = pneg %p126
        $region26: #{tpu_custom_call.1} parent=11 // pred_check_branch
          %220 = sbr.rel (%p218) target = $region28
        $region27: #{tpu_custom_call.1} parent=11 // pred_region
          _
        $region28: #{tpu_custom_call.1} parent=11 // pred_fallthru
          _
        // Predicated region
        $region29: #{tpu_custom_call.1} parent=11 // pred_check
          %p221 = pneg %p147
        $region30: #{tpu_custom_call.1} parent=11 // pred_check_branch
          %223 = sbr.rel (%p221) target = $region32
        $region31: #{tpu_custom_call.1} parent=11 // pred_region
          _
        $region32: #{tpu_custom_call.1} parent=11 // pred_fallthru
          _
        // Predicated region
        $region33: #{tpu_custom_call.1} parent=11 // pred_check
          %p224 = pneg %p168
        $region34: #{tpu_custom_call.1} parent=11 // pred_check_branch
          %226 = sbr.rel (%p224) target = $region36
        $region35: #{tpu_custom_call.1} parent=11 // pred_region
          _
        $region36: #{tpu_custom_call.1} parent=11 // pred_fallthru
          _
      $region12: #{tpu_custom_call.1} parent=5 // pred_fallthru
        _
      %p227 = scmp.lt.s32.totalorder %s16, 2
      // Predicated region
      $region37: #{tpu_custom_call.1} parent=5 // pred_check
        %p228 = pneg %p227
      $region38: #{tpu_custom_call.1} parent=5 // pred_check_branch
        %230 = sbr.rel (%p228) target = $region40
      $region39: #{tpu_custom_call.1} parent=5 // pred_region
        // Predicated region
        $region41: #{tpu_custom_call.1} parent=39 // pred_check
          %p231 = pneg %p36
        $region42: #{tpu_custom_call.1} parent=39 // pred_check_branch
          %233 = sbr.rel (%p231) target = $region44
        $region43: #{tpu_custom_call.1} parent=39 // pred_region
          %s234 = smul.u32 4, %s16
          %p235 = scmp.lt.s32.totalorder %s234, 7
          %s236 = scalar_select %p235, %s234, 7
          %s237 = smul.addr %s236, 8
          %s238 = scalar_lea.vmem %s0, %s237
          %s239 = smul.u32 4, %s16
        $region44: #{tpu_custom_call.1} parent=39 // pred_fallthru
          _
      $region40: #{tpu_custom_call.1} parent=5 // pred_fallthru
        _
      %p240 = scmp.le.s32.totalorder 1, %s16
      %p241 = scmp.lt.s32.totalorder %s16, 3
      %p242 = pnand %p240, %p241
      %p243 = pneg %p242
      // Predicated region
      $region45: #{tpu_custom_call.1} parent=5 // pred_check
        _
      $region46: #{tpu_custom_call.1} parent=5 // pred_check_branch
        %245 = sbr.rel (%p242) target = $region48
      $region47: #{tpu_custom_call.1} parent=5 // pred_region
        %s246 = ssub.s32 %s16, 1
        %s247 = smul.u32 4, %s21
        %p248 = scmp.lt.s32.totalorder %s247, 7
        %s249 = scalar_select %p248, %s247, 7
        %s250 = smul.addr %s249, 8
        %s251 = scalar_lea.vmem %s0, %s250
        %p252 = pneg %p42
        %p253 = pneg %p39
        %p254 = pneg %p63
        %p255 = pneg %p60
        %p256 = pneg %p84
        %p257 = pneg %p81
        %p258 = pneg %p105
        %p259 = pneg %p102
        %p260 = pneg %p126
        %p261 = pneg %p123
        %p262 = pneg %p147
        %p263 = pneg %p144
        %p264 = pneg %p168
        %p265 = pneg %p165
        %p266 = pneg %p194
        %p267 = pneg %p191
        %s268 = sand.u32 %s181, 1
        %s269 = scalar_lea.sflag [#allocation3], %s268
        %s270 = sand.u32 %s181, 1
        %s271 = smul.addr %s270, 32
        %s272 = scalar_lea.vmem [#allocation2], %s271
        %s273 = smul.u32 4, %s21
        %p274 = scmp.lt.s32.totalorder %s273, 7
        %s275 = scalar_select %p274, %s273, 7
        %s276 = smul.addr %s275, 8
        %s277 = scalar_lea.vmem %s0, %s276
        %s278 = smul.u32 4, %s21
        %s279 = smul.u32 4, %s21
        %v280 = vld [vmem:[%s277] sm:$0xff]
        %v281 = vld [vmem:[%s277 + $0x8] sm:$0xff]
        %v282 = vld [vmem:[%s277 + $0x10] sm:$0xff]
        %v283 = vld [vmem:[%s277 + $0x18] sm:$0xff]
        %v284 = vld [vmem:[%s1] sm:$0xff]
        %v285 = vld [vmem:[%s1 + $0x8] sm:$0xff]
        %v286 = vld [vmem:[%s1 + $0x10] sm:$0xff]
        %v287 = vld [vmem:[%s1 + $0x18] sm:$0xff]
        %v288 = vld [vmem:[%s2] sm:$0xff]
        %v289 = vld [vmem:[%s2 + $0x8] sm:$0xff]
        %v290 = vld [vmem:[%s2 + $0x10] sm:$0xff]
        %v291 = vld [vmem:[%s2 + $0x18] sm:$0xff]
        %293 = vset.pattern.permute.xlu0 0
        %294 = vperm.xlu0 %293, %v288
        %v295 = vpop.permute.xlu0 %294
        %298 = vset.pattern.permute.xlu0 0
        %299 = vperm.xlu0 %298, %v289
        %v300 = vpop.permute.xlu0 %299
        %303 = vset.pattern.permute.xlu0 0
        %304 = vperm.xlu0 %303, %v290
        %v305 = vpop.permute.xlu0 %304
        %308 = vset.pattern.permute.xlu0 0
        %309 = vperm.xlu0 %308, %v291
        %v310 = vpop.permute.xlu0 %309
        %vm312 = vcmask 64512
        %v314 = vsel %vm312, %v284, 0
        %v317 = vsel %vm312, %v285, 0
        %v320 = vsel %vm312, %v286, 0
        %v323 = vsel %vm312, %v287, 0
        %325 = vmatprep.subr.mxu0 0.0
        %326 = vmatpush1.msra.mxu0 0.0
        %327 = vmatprep.subr.mxu0 0.0
        %328 = vmatpush1.msra.mxu0 0.0
        %329 = vmatprep.subr.mxu0 0.0
        %330 = vmatpush1.msra.mxu0 0.0
        %331 = vmatprep.subr.mxu0 0.0
        %332 = vmatpush1.msra.mxu0 0.0
        %333 = vmatprep.subr.mxu0 0.0
        %334 = vmatpush1.msra.mxu0 0.0
        %335 = vmatprep.subr.mxu0 0.0
        %336 = vmatpush1.msra.mxu0 0.0
        %337 = vmatprep.subr.mxu0 0.0
        %338 = vmatpush1.msra.mxu0 0.0
        %339 = vmatprep.subr.mxu0 0.0
        %340 = vmatpush1.msra.mxu0 0.0
        %341 = vmatprep.subr.mxu0 0.0
        %342 = vmatpush1.msra.mxu0 0.0
        %343 = vmatprep.subr.mxu0 0.0
        %344 = vmatpush1.msra.mxu0 0.0
        %345 = vmatprep.subr.mxu0 0.0
        %346 = vmatpush1.msra.mxu0 0.0
        %347 = vmatprep.subr.mxu0 0.0
        %348 = vmatpush1.msra.mxu0 0.0
        %349 = vmatprep.subr.mxu0 0.0
        %350 = vmatpush1.msra.mxu0 0.0
        %351 = vmatprep.subr.mxu0 0.0
        %352 = vmatpush1.msra.mxu0 0.0
        %353 = vmatprep.subr.mxu0 0.0
        %354 = vmatpush1.msra.mxu0 0.0
        %355 = vmatprep.subr.mxu0 %v281
        %356 = vmatpush1.msra.mxu0 %v280
        %357 = vmatprep.subr.mxu0 0.0
        %358 = vmatpush2.msra.mxu0 0.0
        %359 = vmatprep.subr.mxu0 0.0
        %360 = vmatpush2.msra.mxu0 0.0
        %361 = vmatprep.subr.mxu0 0.0
        %362 = vmatpush2.msra.mxu0 0.0
        %363 = vmatprep.subr.mxu0 0.0
        %364 = vmatpush2.msra.mxu0 0.0
        %365 = vmatprep.subr.mxu0 0.0
        %366 = vmatpush2.msra.mxu0 0.0
        %367 = vmatprep.subr.mxu0 0.0
        %368 = vmatpush2.msra.mxu0 0.0
        %369 = vmatprep.subr.mxu0 0.0
        %370 = vmatpush2.msra.mxu0 0.0
        %371 = vmatprep.subr.mxu0 0.0
        %372 = vmatpush2.msra.mxu0 0.0
        %373 = vmatprep.subr.mxu0 0.0
        %374 = vmatpush2.msra.mxu0 0.0
        %375 = vmatprep.subr.mxu0 0.0
        %376 = vmatpush2.msra.mxu0 0.0
        %377 = vmatprep.subr.mxu0 0.0
        %378 = vmatpush2.msra.mxu0 0.0
        %379 = vmatprep.subr.mxu0 0.0
        %380 = vmatpush2.msra.mxu0 0.0
        %381 = vmatprep.subr.mxu0 0.0
        %382 = vmatpush2.msra.mxu0 0.0
        %383 = vmatprep.subr.mxu0 0.0
        %384 = vmatpush2.msra.mxu0 0.0
        %385 = vmatprep.subr.mxu0 0.0
        %386 = vmatpush2.msra.mxu0 0.0
        %387 = vmatprep.subr.mxu0 0.0
        %388 = vmatpush2.msra.mxu0 0.0
        %389 = vmatprep.mubr.f32.mxu0 0.0
        %390 = vmatmul.mubr.f32.gmra.mxu0 %v314
        %v391 = vpop.f32.mrf.mxu0
        %v392 = vadd.f32 %v295, %v391
        %v393 = vpop.f32.mrf.mxu0
        %v394 = vadd.f32 %v295, %v393
        %395 = vmatprep.mubr.f32.mxu0 0.0
        %396 = vmatmul.mubr.f32.gmra.mxu0 %v317
        %v397 = vpop.f32.mrf.mxu0
        %v398 = vadd.f32 %v300, %v397
        %v399 = vpop.f32.mrf.mxu0
        %v400 = vadd.f32 %v300, %v399
        %401 = vmatprep.mubr.f32.mxu0 0.0
        %402 = vmatmul.mubr.f32.gmra.mxu0 %v320
        %v403 = vpop.f32.mrf.mxu0
        %v404 = vadd.f32 %v305, %v403
        %v405 = vpop.f32.mrf.mxu0
        %v406 = vadd.f32 %v305, %v405
        %407 = vmatprep.mubr.f32.mxu0 0.0
        %408 = vmatmul.mubr.f32.gmra.mxu0 %v323
        %v409 = vpop.f32.mrf.mxu0
        %v410 = vadd.f32 %v310, %v409
        %v411 = vpop.f32.mrf.mxu0
        %v412 = vadd.f32 %v310, %v411
        %413 = vdwg.mxu0
        %414 = vmatprep.subr.mxu0 0.0
        %415 = vmatpush1.msra.mxu0 0.0
        %416 = vmatprep.subr.mxu0 0.0
        %417 = vmatpush1.msra.mxu0 0.0
        %418 = vmatprep.subr.mxu0 0.0
        %419 = vmatpush1.msra.mxu0 0.0
        %420 = vmatprep.subr.mxu0 0.0
        %421 = vmatpush1.msra.mxu0 0.0
        %422 = vmatprep.subr.mxu0 0.0
        %423 = vmatpush1.msra.mxu0 0.0
        %424 = vmatprep.subr.mxu0 0.0
        %425 = vmatpush1.msra.mxu0 0.0
        %426 = vmatprep.subr.mxu0 0.0
        %427 = vmatpush1.msra.mxu0 0.0
        %428 = vmatprep.subr.mxu0 0.0
        %429 = vmatpush1.msra.mxu0 0.0
        %430 = vmatprep.subr.mxu0 0.0
        %431 = vmatpush1.msra.mxu0 0.0
        %432 = vmatprep.subr.mxu0 0.0
        %433 = vmatpush1.msra.mxu0 0.0
        %434 = vmatprep.subr.mxu0 0.0
        %435 = vmatpush1.msra.mxu0 0.0
        %436 = vmatprep.subr.mxu0 0.0
        %437 = vmatpush1.msra.mxu0 0.0
        %438 = vmatprep.subr.mxu0 0.0
        %439 = vmatpush1.msra.mxu0 0.0
        %440 = vmatprep.subr.mxu0 0.0
        %441 = vmatpush1.msra.mxu0 0.0
        %442 = vmatprep.subr.mxu0 0.0
        %443 = vmatpush1.msra.mxu0 0.0
        %444 = vmatprep.subr.mxu0 %v283
        %445 = vmatpush1.msra.mxu0 %v282
        %446 = vmatprep.subr.mxu0 0.0
        %447 = vmatpush2.msra.mxu0 0.0
        %448 = vmatprep.subr.mxu0 0.0
        %449 = vmatpush2.msra.mxu0 0.0
        %450 = vmatprep.subr.mxu0 0.0
        %451 = vmatpush2.msra.mxu0 0.0
        %452 = vmatprep.subr.mxu0 0.0
        %453 = vmatpush2.msra.mxu0 0.0
        %454 = vmatprep.subr.mxu0 0.0
        %455 = vmatpush2.msra.mxu0 0.0
        %456 = vmatprep.subr.mxu0 0.0
        %457 = vmatpush2.msra.mxu0 0.0
        %458 = vmatprep.subr.mxu0 0.0
        %459 = vmatpush2.msra.mxu0 0.0
        %460 = vmatprep.subr.mxu0 0.0
        %461 = vmatpush2.msra.mxu0 0.0
        %462 = vmatprep.subr.mxu0 0.0
        %463 = vmatpush2.msra.mxu0 0.0
        %464 = vmatprep.subr.mxu0 0.0
        %465 = vmatpush2.msra.mxu0 0.0
        %466 = vmatprep.subr.mxu0 0.0
        %467 = vmatpush2.msra.mxu0 0.0
        %468 = vmatprep.subr.mxu0 0.0
        %469 = vmatpush2.msra.mxu0 0.0
        %470 = vmatprep.subr.mxu0 0.0
        %471 = vmatpush2.msra.mxu0 0.0
        %472 = vmatprep.subr.mxu0 0.0
        %473 = vmatpush2.msra.mxu0 0.0
        %474 = vmatprep.subr.mxu0 0.0
        %475 = vmatpush2.msra.mxu0 0.0
        %476 = vmatprep.subr.mxu0 0.0
        %477 = vmatpush2.msra.mxu0 0.0
        %478 = vmatprep.mubr.f32.mxu0 0.0
        %479 = vmatmul.mubr.f32.gmra.mxu0 %v314
        %v480 = vpop.f32.mrf.mxu0
        %v481 = vadd.f32 %v295, %v480
        %v482 = vpop.f32.mrf.mxu0
        %v483 = vadd.f32 %v295, %v482
        %484 = vmatprep.mubr.f32.mxu0 0.0
        %485 = vmatmul.mubr.f32.gmra.mxu0 %v317
        %v486 = vpop.f32.mrf.mxu0
        %v487 = vadd.f32 %v300, %v486
        %v488 = vpop.f32.mrf.mxu0
        %v489 = vadd.f32 %v300, %v488
        %490 = vmatprep.mubr.f32.mxu0 0.0
        %491 = vmatmul.mubr.f32.gmra.mxu0 %v320
        %v492 = vpop.f32.mrf.mxu0
        %v493 = vadd.f32 %v305, %v492
        %v494 = vpop.f32.mrf.mxu0
        %v495 = vadd.f32 %v305, %v494
        %496 = vmatprep.mubr.f32.mxu0 0.0
        %497 = vmatmul.mubr.f32.gmra.mxu0 %v323
        %v498 = vpop.f32.mrf.mxu0
        %v499 = vadd.f32 %v310, %v498
        %v500 = vpop.f32.mrf.mxu0
        %v501 = vadd.f32 %v310, %v500
        %502 = vdwg.mxu0
        %v503 = vtanh.pop %v392
        %v504 = vtanh.pop %v394
        %v505 = vtanh.pop %v481
        %v506 = vtanh.pop %v483
        %v507 = vtanh.pop %v398
        %v508 = vtanh.pop %v400
        %v509 = vtanh.pop %v487
        %v510 = vtanh.pop %v489
        %v511 = vtanh.pop %v404
        %v512 = vtanh.pop %v406
        %v513 = vtanh.pop %v493
        %v514 = vtanh.pop %v495
        %v515 = vtanh.pop %v410
        %v516 = vtanh.pop %v412
        %v517 = vtanh.pop %v499
        %v518 = vtanh.pop %v501
        %v519 = vld [vmem:[%s3] sm:$0xff]
        %v520 = vld [vmem:[%s3 + $0x8] sm:$0xff]
        %v521 = vld [vmem:[%s3 + $0x10] sm:$0xff]
        %v522 = vld [vmem:[%s3 + $0x18] sm:$0xff]
        %v523 = vld [vmem:[%s4] sm:$0xff]
        %v524 = vld [vmem:[%s4 + $0x8] sm:$0xff]
        %v525 = vld [vmem:[%s4 + $0x10] sm:$0xff]
        %v526 = vld [vmem:[%s4 + $0x18] sm:$0xff]
        %528 = vset.pattern.permute.xlu0 0
        %529 = vperm.xlu0 %528, %v523
        %v530 = vpop.permute.xlu0 %529
        %533 = vset.pattern.permute.xlu0 0
        %534 = vperm.xlu0 %533, %v524
        %v535 = vpop.permute.xlu0 %534
        %538 = vset.pattern.permute.xlu0 0
        %539 = vperm.xlu0 %538, %v525
        %v540 = vpop.permute.xlu0 %539
        %543 = vset.pattern.permute.xlu0 0
        %544 = vperm.xlu0 %543, %v526
        %v545 = vpop.permute.xlu0 %544
        %vm547 = vcmask 261120
        %v549 = vsel %vm547, %v519, 0
        %v552 = vsel %vm547, %v520, 0
        %v555 = vsel %vm547, %v521, 0
        %v558 = vsel %vm547, %v522, 0
        %560 = vmatprep.subr.mxu0 0.0
        %561 = vmatpush1.msra.mxu0 0.0
        %562 = vmatprep.subr.mxu0 0.0
        %563 = vmatpush1.msra.mxu0 0.0
        %564 = vmatprep.subr.mxu0 0.0
        %565 = vmatpush1.msra.mxu0 0.0
        %566 = vmatprep.subr.mxu0 0.0
        %567 = vmatpush1.msra.mxu0 0.0
        %568 = vmatprep.subr.mxu0 0.0
        %569 = vmatpush1.msra.mxu0 0.0
        %570 = vmatprep.subr.mxu0 0.0
        %571 = vmatpush1.msra.mxu0 0.0
        %572 = vmatprep.subr.mxu0 0.0
        %573 = vmatpush1.msra.mxu0 0.0
        %574 = vmatprep.subr.mxu0 0.0
        %575 = vmatpush1.msra.mxu0 0.0
        %576 = vmatprep.subr.mxu0 0.0
        %577 = vmatpush1.msra.mxu0 0.0
        %578 = vmatprep.subr.mxu0 0.0
        %579 = vmatpush1.msra.mxu0 0.0
        %580 = vmatprep.subr.mxu0 0.0
        %581 = vmatpush1.msra.mxu0 0.0
        %582 = vmatprep.subr.mxu0 0.0
        %583 = vmatpush1.msra.mxu0 0.0
        %584 = vmatprep.subr.mxu0 %v516
        %585 = vmatpush1.msra.mxu0 %v515
        %586 = vmatprep.subr.mxu0 %v512
        %587 = vmatpush1.msra.mxu0 %v511
        %588 = vmatprep.subr.mxu0 %v508
        %589 = vmatpush1.msra.mxu0 %v507
        %590 = vmatprep.subr.mxu0 %v504
        %591 = vmatpush1.msra.mxu0 %v503
        %592 = vmatprep.subr.mxu0 0.0
        %593 = vmatpush2.msra.mxu0 0.0
        %594 = vmatprep.subr.mxu0 0.0
        %595 = vmatpush2.msra.mxu0 0.0
        %596 = vmatprep.subr.mxu0 0.0
        %597 = vmatpush2.msra.mxu0 0.0
        %598 = vmatprep.subr.mxu0 0.0
        %599 = vmatpush2.msra.mxu0 0.0
        %600 = vmatprep.subr.mxu0 0.0
        %601 = vmatpush2.msra.mxu0 0.0
        %602 = vmatprep.subr.mxu0 0.0
        %603 = vmatpush2.msra.mxu0 0.0
        %604 = vmatprep.subr.mxu0 0.0
        %605 = vmatpush2.msra.mxu0 0.0
        %606 = vmatprep.subr.mxu0 0.0
        %607 = vmatpush2.msra.mxu0 0.0
        %608 = vmatprep.subr.mxu0 0.0
        %609 = vmatpush2.msra.mxu0 0.0
        %610 = vmatprep.subr.mxu0 0.0
        %611 = vmatpush2.msra.mxu0 0.0
        %612 = vmatprep.subr.mxu0 0.0
        %613 = vmatpush2.msra.mxu0 0.0
        %614 = vmatprep.subr.mxu0 0.0
        %615 = vmatpush2.msra.mxu0 0.0
        %616 = vmatprep.subr.mxu0 0.0
        %617 = vmatpush2.msra.mxu0 0.0
        %618 = vmatprep.subr.mxu0 0.0
        %619 = vmatpush2.msra.mxu0 0.0
        %620 = vmatprep.subr.mxu0 0.0
        %621 = vmatpush2.msra.mxu0 0.0
        %622 = vmatprep.subr.mxu0 0.0
        %623 = vmatpush2.msra.mxu0 0.0
        %624 = vmatprep.mubr.f32.mxu0 0.0
        %625 = vmatmul.mubr.f32.gmra.mxu0 %v549
        %v626 = vpop.f32.mrf.mxu0
        %v627 = vadd.f32 %v530, %v626
        %v628 = vpop.f32.mrf.mxu0
        %v629 = vadd.f32 %v530, %v628
        %630 = vmatprep.mubr.f32.mxu0 0.0
        %631 = vmatmul.mubr.f32.gmra.mxu0 %v552
        %v632 = vpop.f32.mrf.mxu0
        %v633 = vadd.f32 %v535, %v632
        %v634 = vpop.f32.mrf.mxu0
        %v635 = vadd.f32 %v535, %v634
        %636 = vmatprep.mubr.f32.mxu0 0.0
        %637 = vmatmul.mubr.f32.gmra.mxu0 %v555
        %v638 = vpop.f32.mrf.mxu0
        %v639 = vadd.f32 %v540, %v638
        %v640 = vpop.f32.mrf.mxu0
        %v641 = vadd.f32 %v540, %v640
        %642 = vmatprep.mubr.f32.mxu0 0.0
        %643 = vmatmul.mubr.f32.gmra.mxu0 %v558
        %v644 = vpop.f32.mrf.mxu0
        %v645 = vadd.f32 %v545, %v644
        %v646 = vpop.f32.mrf.mxu0
        %v647 = vadd.f32 %v545, %v646
        %648 = vdwg.mxu0
        %649 = vmatprep.subr.mxu0 0.0
        %650 = vmatpush1.msra.mxu0 0.0
        %651 = vmatprep.subr.mxu0 0.0
        %652 = vmatpush1.msra.mxu0 0.0
        %653 = vmatprep.subr.mxu0 0.0
        %654 = vmatpush1.msra.mxu0 0.0
        %655 = vmatprep.subr.mxu0 0.0
        %656 = vmatpush1.msra.mxu0 0.0
        %657 = vmatprep.subr.mxu0 0.0
        %658 = vmatpush1.msra.mxu0 0.0
        %659 = vmatprep.subr.mxu0 0.0
        %660 = vmatpush1.msra.mxu0 0.0
        %661 = vmatprep.subr.mxu0 0.0
        %662 = vmatpush1.msra.mxu0 0.0
        %663 = vmatprep.subr.mxu0 0.0
        %664 = vmatpush1.msra.mxu0 0.0
        %665 = vmatprep.subr.mxu0 0.0
        %666 = vmatpush1.msra.mxu0 0.0
        %667 = vmatprep.subr.mxu0 0.0
        %668 = vmatpush1.msra.mxu0 0.0
        %669 = vmatprep.subr.mxu0 0.0
        %670 = vmatpush1.msra.mxu0 0.0
        %671 = vmatprep.subr.mxu0 0.0
        %672 = vmatpush1.msra.mxu0 0.0
        %673 = vmatprep.subr.mxu0 %v518
        %674 = vmatpush1.msra.mxu0 %v517
        %675 = vmatprep.subr.mxu0 %v514
        %676 = vmatpush1.msra.mxu0 %v513
        %677 = vmatprep.subr.mxu0 %v510
        %678 = vmatpush1.msra.mxu0 %v509
        %679 = vmatprep.subr.mxu0 %v506
        %680 = vmatpush1.msra.mxu0 %v505
        %681 = vmatprep.subr.mxu0 0.0
        %682 = vmatpush2.msra.mxu0 0.0
        %683 = vmatprep.subr.mxu0 0.0
        %684 = vmatpush2.msra.mxu0 0.0
        %685 = vmatprep.subr.mxu0 0.0
        %686 = vmatpush2.msra.mxu0 0.0
        %687 = vmatprep.subr.mxu0 0.0
        %688 = vmatpush2.msra.mxu0 0.0
        %689 = vmatprep.subr.mxu0 0.0
        %690 = vmatpush2.msra.mxu0 0.0
        %691 = vmatprep.subr.mxu0 0.0
        %692 = vmatpush2.msra.mxu0 0.0
        %693 = vmatprep.subr.mxu0 0.0
        %694 = vmatpush2.msra.mxu0 0.0
        %695 = vmatprep.subr.mxu0 0.0
        %696 = vmatpush2.msra.mxu0 0.0
        %697 = vmatprep.subr.mxu0 0.0
        %698 = vmatpush2.msra.mxu0 0.0
        %699 = vmatprep.subr.mxu0 0.0
        %700 = vmatpush2.msra.mxu0 0.0
        %701 = vmatprep.subr.mxu0 0.0
        %702 = vmatpush2.msra.mxu0 0.0
        %703 = vmatprep.subr.mxu0 0.0
        %704 = vmatpush2.msra.mxu0 0.0
        %705 = vmatprep.subr.mxu0 0.0
        %706 = vmatpush2.msra.mxu0 0.0
        %707 = vmatprep.subr.mxu0 0.0
        %708 = vmatpush2.msra.mxu0 0.0
        %709 = vmatprep.subr.mxu0 0.0
        %710 = vmatpush2.msra.mxu0 0.0
        %711 = vmatprep.subr.mxu0 0.0
        %712 = vmatpush2.msra.mxu0 0.0
        %713 = vmatprep.mubr.f32.mxu0 0.0
        %714 = vmatmul.mubr.f32.gmra.mxu0 %v549
        %v715 = vpop.f32.mrf.mxu0
        %v716 = vadd.f32 %v530, %v715
        %v717 = vpop.f32.mrf.mxu0
        %v718 = vadd.f32 %v530, %v717
        %719 = vmatprep.mubr.f32.mxu0 0.0
        %720 = vmatmul.mubr.f32.gmra.mxu0 %v552
        %v721 = vpop.f32.mrf.mxu0
        %v722 = vadd.f32 %v535, %v721
        %v723 = vpop.f32.mrf.mxu0
        %v724 = vadd.f32 %v535, %v723
        %725 = vmatprep.mubr.f32.mxu0 0.0
        %726 = vmatmul.mubr.f32.gmra.mxu0 %v555
        %v727 = vpop.f32.mrf.mxu0
        %v728 = vadd.f32 %v540, %v727
        %v729 = vpop.f32.mrf.mxu0
        %v730 = vadd.f32 %v540, %v729
        %731 = vmatprep.mubr.f32.mxu0 0.0
        %732 = vmatmul.mubr.f32.gmra.mxu0 %v558
        %v733 = vpop.f32.mrf.mxu0
        %v734 = vadd.f32 %v545, %v733
        %v735 = vpop.f32.mrf.mxu0
        %v736 = vadd.f32 %v545, %v735
        %737 = vdwg.mxu0
        %v738 = vtanh.pop %v627
        %v739 = vtanh.pop %v629
        %v740 = vtanh.pop %v716
        %v741 = vtanh.pop %v718
        %v742 = vtanh.pop %v633
        %v743 = vtanh.pop %v635
        %v744 = vtanh.pop %v722
        %v745 = vtanh.pop %v724
        %v746 = vtanh.pop %v639
        %v747 = vtanh.pop %v641
        %v748 = vtanh.pop %v728
        %v749 = vtanh.pop %v730
        %v750 = vtanh.pop %v645
        %v751 = vtanh.pop %v647
        %v752 = vtanh.pop %v734
        %v753 = vtanh.pop %v736
        %s754 = scalar_lea.vmem %s3, 32
        %v755 = vld [vmem:[%s754] sm:$0xff]
        %v756 = vld [vmem:[%s754 + $0x8] sm:$0xff]
        %v757 = vld [vmem:[%s754 + $0x10] sm:$0xff]
        %v758 = vld [vmem:[%s754 + $0x18] sm:$0xff]
        %s759 = scalar_lea.vmem %s4, 32
        %v760 = vld [vmem:[%s759] sm:$0xff]
        %v761 = vld [vmem:[%s759 + $0x8] sm:$0xff]
        %v762 = vld [vmem:[%s759 + $0x10] sm:$0xff]
        %v763 = vld [vmem:[%s759 + $0x18] sm:$0xff]
        %765 = vset.pattern.permute.xlu0 0
        %766 = vperm.xlu0 %765, %v760
        %v767 = vpop.permute.xlu0 %766
        %770 = vset.pattern.permute.xlu0 0
        %771 = vperm.xlu0 %770, %v761
        %v772 = vpop.permute.xlu0 %771
        %775 = vset.pattern.permute.xlu0 0
        %776 = vperm.xlu0 %775, %v762
        %v777 = vpop.permute.xlu0 %776
        %780 = vset.pattern.permute.xlu0 0
        %781 = vperm.xlu0 %780, %v763
        %v782 = vpop.permute.xlu0 %781
        %v785 = vsel %vm547, %v755, 0
        %v788 = vsel %vm547, %v756, 0
        %v791 = vsel %vm547, %v757, 0
        %v794 = vsel %vm547, %v758, 0
        %796 = vmatprep.subr.mxu0 0.0
        %797 = vmatpush1.msra.mxu0 0.0
        %798 = vmatprep.subr.mxu0 0.0
        %799 = vmatpush1.msra.mxu0 0.0
        %800 = vmatprep.subr.mxu0 0.0
        %801 = vmatpush1.msra.mxu0 0.0
        %802 = vmatprep.subr.mxu0 0.0
        %803 = vmatpush1.msra.mxu0 0.0
        %804 = vmatprep.subr.mxu0 0.0
        %805 = vmatpush1.msra.mxu0 0.0
        %806 = vmatprep.subr.mxu0 0.0
        %807 = vmatpush1.msra.mxu0 0.0
        %808 = vmatprep.subr.mxu0 0.0
        %809 = vmatpush1.msra.mxu0 0.0
        %810 = vmatprep.subr.mxu0 0.0
        %811 = vmatpush1.msra.mxu0 0.0
        %812 = vmatprep.subr.mxu0 0.0
        %813 = vmatpush1.msra.mxu0 0.0
        %814 = vmatprep.subr.mxu0 0.0
        %815 = vmatpush1.msra.mxu0 0.0
        %816 = vmatprep.subr.mxu0 0.0
        %817 = vmatpush1.msra.mxu0 0.0
        %818 = vmatprep.subr.mxu0 0.0
        %819 = vmatpush1.msra.mxu0 0.0
        %820 = vmatprep.subr.mxu0 %v751
        %821 = vmatpush1.msra.mxu0 %v750
        %822 = vmatprep.subr.mxu0 %v747
        %823 = vmatpush1.msra.mxu0 %v746
        %824 = vmatprep.subr.mxu0 %v743
        %825 = vmatpush1.msra.mxu0 %v742
        %826 = vmatprep.subr.mxu0 %v739
        %827 = vmatpush1.msra.mxu0 %v738
        %828 = vmatprep.subr.mxu0 0.0
        %829 = vmatpush2.msra.mxu0 0.0
        %830 = vmatprep.subr.mxu0 0.0
        %831 = vmatpush2.msra.mxu0 0.0
        %832 = vmatprep.subr.mxu0 0.0
        %833 = vmatpush2.msra.mxu0 0.0
        %834 = vmatprep.subr.mxu0 0.0
        %835 = vmatpush2.msra.mxu0 0.0
        %836 = vmatprep.subr.mxu0 0.0
        %837 = vmatpush2.msra.mxu0 0.0
        %838 = vmatprep.subr.mxu0 0.0
        %839 = vmatpush2.msra.mxu0 0.0
        %840 = vmatprep.subr.mxu0 0.0
        %841 = vmatpush2.msra.mxu0 0.0
        %842 = vmatprep.subr.mxu0 0.0
        %843 = vmatpush2.msra.mxu0 0.0
        %844 = vmatprep.subr.mxu0 0.0
        %845 = vmatpush2.msra.mxu0 0.0
        %846 = vmatprep.subr.mxu0 0.0
        %847 = vmatpush2.msra.mxu0 0.0
        %848 = vmatprep.subr.mxu0 0.0
        %849 = vmatpush2.msra.mxu0 0.0
        %850 = vmatprep.subr.mxu0 0.0
        %851 = vmatpush2.msra.mxu0 0.0
        %852 = vmatprep.subr.mxu0 0.0
        %853 = vmatpush2.msra.mxu0 0.0
        %854 = vmatprep.subr.mxu0 0.0
        %855 = vmatpush2.msra.mxu0 0.0
        %856 = vmatprep.subr.mxu0 0.0
        %857 = vmatpush2.msra.mxu0 0.0
        %858 = vmatprep.subr.mxu0 0.0
        %859 = vmatpush2.msra.mxu0 0.0
        %860 = vmatprep.mubr.f32.mxu0 0.0
        %861 = vmatmul.mubr.f32.gmra.mxu0 %v785
        %v862 = vpop.f32.mrf.mxu0
        %v863 = vadd.f32 %v767, %v862
        %v864 = vpop.f32.mrf.mxu0
        %v865 = vadd.f32 %v767, %v864
        %866 = vmatprep.mubr.f32.mxu0 0.0
        %867 = vmatmul.mubr.f32.gmra.mxu0 %v788
        %v868 = vpop.f32.mrf.mxu0
        %v869 = vadd.f32 %v772, %v868
        %v870 = vpop.f32.mrf.mxu0
        %v871 = vadd.f32 %v772, %v870
        %872 = vmatprep.mubr.f32.mxu0 0.0
        %873 = vmatmul.mubr.f32.gmra.mxu0 %v791
        %v874 = vpop.f32.mrf.mxu0
        %v875 = vadd.f32 %v777, %v874
        %v876 = vpop.f32.mrf.mxu0
        %v877 = vadd.f32 %v777, %v876
        %878 = vmatprep.mubr.f32.mxu0 0.0
        %879 = vmatmul.mubr.f32.gmra.mxu0 %v794
        %v880 = vpop.f32.mrf.mxu0
        %v881 = vadd.f32 %v782, %v880
        %v882 = vpop.f32.mrf.mxu0
        %v883 = vadd.f32 %v782, %v882
        %884 = vdwg.mxu0
        %885 = vmatprep.subr.mxu0 0.0
        %886 = vmatpush1.msra.mxu0 0.0
        %887 = vmatprep.subr.mxu0 0.0
        %888 = vmatpush1.msra.mxu0 0.0
        %889 = vmatprep.subr.mxu0 0.0
        %890 = vmatpush1.msra.mxu0 0.0
        %891 = vmatprep.subr.mxu0 0.0
        %892 = vmatpush1.msra.mxu0 0.0
        %893 = vmatprep.subr.mxu0 0.0
        %894 = vmatpush1.msra.mxu0 0.0
        %895 = vmatprep.subr.mxu0 0.0
        %896 = vmatpush1.msra.mxu0 0.0
        %897 = vmatprep.subr.mxu0 0.0
        %898 = vmatpush1.msra.mxu0 0.0
        %899 = vmatprep.subr.mxu0 0.0
        %900 = vmatpush1.msra.mxu0 0.0
        %901 = vmatprep.subr.mxu0 0.0
        %902 = vmatpush1.msra.mxu0 0.0
        %903 = vmatprep.subr.mxu0 0.0
        %904 = vmatpush1.msra.mxu0 0.0
        %905 = vmatprep.subr.mxu0 0.0
        %906 = vmatpush1.msra.mxu0 0.0
        %907 = vmatprep.subr.mxu0 0.0
        %908 = vmatpush1.msra.mxu0 0.0
        %909 = vmatprep.subr.mxu0 %v753
        %910 = vmatpush1.msra.mxu0 %v752
        %911 = vmatprep.subr.mxu0 %v749
        %912 = vmatpush1.msra.mxu0 %v748
        %913 = vmatprep.subr.mxu0 %v745
        %914 = vmatpush1.msra.mxu0 %v744
        %915 = vmatprep.subr.mxu0 %v741
        %916 = vmatpush1.msra.mxu0 %v740
        %917 = vmatprep.subr.mxu0 0.0
        %918 = vmatpush2.msra.mxu0 0.0
        %919 = vmatprep.subr.mxu0 0.0
        %920 = vmatpush2.msra.mxu0 0.0
        %921 = vmatprep.subr.mxu0 0.0
        %922 = vmatpush2.msra.mxu0 0.0
        %923 = vmatprep.subr.mxu0 0.0
        %924 = vmatpush2.msra.mxu0 0.0
        %925 = vmatprep.subr.mxu0 0.0
        %926 = vmatpush2.msra.mxu0 0.0
        %927 = vmatprep.subr.mxu0 0.0
        %928 = vmatpush2.msra.mxu0 0.0
        %929 = vmatprep.subr.mxu0 0.0
        %930 = vmatpush2.msra.mxu0 0.0
        %931 = vmatprep.subr.mxu0 0.0
        %932 = vmatpush2.msra.mxu0 0.0
        %933 = vmatprep.subr.mxu0 0.0
        %934 = vmatpush2.msra.mxu0 0.0
        %935 = vmatprep.subr.mxu0 0.0
        %936 = vmatpush2.msra.mxu0 0.0
        %937 = vmatprep.subr.mxu0 0.0
        %938 = vmatpush2.msra.mxu0 0.0
        %939 = vmatprep.subr.mxu0 0.0
        %940 = vmatpush2.msra.mxu0 0.0
        %941 = vmatprep.subr.mxu0 0.0
        %942 = vmatpush2.msra.mxu0 0.0
        %943 = vmatprep.subr.mxu0 0.0
        %944 = vmatpush2.msra.mxu0 0.0
        %945 = vmatprep.subr.mxu0 0.0
        %946 = vmatpush2.msra.mxu0 0.0
        %947 = vmatprep.subr.mxu0 0.0
        %948 = vmatpush2.msra.mxu0 0.0
        %949 = vmatprep.mubr.f32.mxu0 0.0
        %950 = vmatmul.mubr.f32.gmra.mxu0 %v785
        %v951 = vpop.f32.mrf.mxu0
        %v952 = vadd.f32 %v767, %v951
        %v953 = vpop.f32.mrf.mxu0
        %v954 = vadd.f32 %v767, %v953
        %955 = vmatprep.mubr.f32.mxu0 0.0
        %956 = vmatmul.mubr.f32.gmra.mxu0 %v788
        %v957 = vpop.f32.mrf.mxu0
        %v958 = vadd.f32 %v772, %v957
        %v959 = vpop.f32.mrf.mxu0
        %v960 = vadd.f32 %v772, %v959
        %961 = vmatprep.mubr.f32.mxu0 0.0
        %962 = vmatmul.mubr.f32.gmra.mxu0 %v791
        %v963 = vpop.f32.mrf.mxu0
        %v964 = vadd.f32 %v777, %v963
        %v965 = vpop.f32.mrf.mxu0
        %v966 = vadd.f32 %v777, %v965
        %967 = vmatprep.mubr.f32.mxu0 0.0
        %968 = vmatmul.mubr.f32.gmra.mxu0 %v794
        %v969 = vpop.f32.mrf.mxu0
        %v970 = vadd.f32 %v782, %v969
        %v971 = vpop.f32.mrf.mxu0
        %v972 = vadd.f32 %v782, %v971
        %973 = vdwg.mxu0
        %v974 = vtanh.pop %v863
        %v975 = vtanh.pop %v865
        %v976 = vtanh.pop %v952
        %v977 = vtanh.pop %v954
        %v978 = vtanh.pop %v869
        %v979 = vtanh.pop %v871
        %v980 = vtanh.pop %v958
        %v981 = vtanh.pop %v960
        %v982 = vtanh.pop %v875
        %v983 = vtanh.pop %v877
        %v984 = vtanh.pop %v964
        %v985 = vtanh.pop %v966
        %v986 = vtanh.pop %v881
        %v987 = vtanh.pop %v883
        %v988 = vtanh.pop %v970
        %v989 = vtanh.pop %v972
        %v990 = vld [vmem:[%s5] sm:$0xff]
        %v991 = vld [vmem:[%s6] sm:$0xff]
        %993 = vset.pattern.permute.xlu0 0
        %994 = vperm.xlu0 %993, %v991
        %v995 = vpop.permute.xlu0 %994
        %v998 = vsel %vm547, %v990, 0
        %1000 = vmatprep.subr.mxu0 0.0
        %1001 = vmatpush1.msra.mxu0 0.0
        %1002 = vmatprep.subr.mxu0 0.0
        %1003 = vmatpush1.msra.mxu0 0.0
        %1004 = vmatprep.subr.mxu0 0.0
        %1005 = vmatpush1.msra.mxu0 0.0
        %1006 = vmatprep.subr.mxu0 0.0
        %1007 = vmatpush1.msra.mxu0 0.0
        %1008 = vmatprep.subr.mxu0 0.0
        %1009 = vmatpush1.msra.mxu0 0.0
        %1010 = vmatprep.subr.mxu0 0.0
        %1011 = vmatpush1.msra.mxu0 0.0
        %1012 = vmatprep.subr.mxu0 0.0
        %1013 = vmatpush1.msra.mxu0 0.0
        %1014 = vmatprep.subr.mxu0 0.0
        %1015 = vmatpush1.msra.mxu0 0.0
        %1016 = vmatprep.subr.mxu0 0.0
        %1017 = vmatpush1.msra.mxu0 0.0
        %1018 = vmatprep.subr.mxu0 0.0
        %1019 = vmatpush1.msra.mxu0 0.0
        %1020 = vmatprep.subr.mxu0 0.0
        %1021 = vmatpush1.msra.mxu0 0.0
        %1022 = vmatprep.subr.mxu0 0.0
        %1023 = vmatpush1.msra.mxu0 0.0
        %1024 = vmatprep.subr.mxu0 %v987
        %1025 = vmatpush1.msra.mxu0 %v986
        %1026 = vmatprep.subr.mxu0 %v983
        %1027 = vmatpush1.msra.mxu0 %v982
        %1028 = vmatprep.subr.mxu0 %v979
        %1029 = vmatpush1.msra.mxu0 %v978
        %1030 = vmatprep.subr.mxu0 %v975
        %1031 = vmatpush1.msra.mxu0 %v974
        %1032 = vmatprep.subr.mxu0 0.0
        %1033 = vmatpush2.msra.mxu0 0.0
        %1034 = vmatprep.subr.mxu0 0.0
        %1035 = vmatpush2.msra.mxu0 0.0
        %1036 = vmatprep.subr.mxu0 0.0
        %1037 = vmatpush2.msra.mxu0 0.0
        %1038 = vmatprep.subr.mxu0 0.0
        %1039 = vmatpush2.msra.mxu0 0.0
        %1040 = vmatprep.subr.mxu0 0.0
        %1041 = vmatpush2.msra.mxu0 0.0
        %1042 = vmatprep.subr.mxu0 0.0
        %1043 = vmatpush2.msra.mxu0 0.0
        %1044 = vmatprep.subr.mxu0 0.0
        %1045 = vmatpush2.msra.mxu0 0.0
        %1046 = vmatprep.subr.mxu0 0.0
        %1047 = vmatpush2.msra.mxu0 0.0
        %1048 = vmatprep.subr.mxu0 0.0
        %1049 = vmatpush2.msra.mxu0 0.0
        %1050 = vmatprep.subr.mxu0 0.0
        %1051 = vmatpush2.msra.mxu0 0.0
        %1052 = vmatprep.subr.mxu0 0.0
        %1053 = vmatpush2.msra.mxu0 0.0
        %1054 = vmatprep.subr.mxu0 0.0
        %1055 = vmatpush2.msra.mxu0 0.0
        %1056 = vmatprep.subr.mxu0 0.0
        %1057 = vmatpush2.msra.mxu0 0.0
        %1058 = vmatprep.subr.mxu0 0.0
        %1059 = vmatpush2.msra.mxu0 0.0
        %1060 = vmatprep.subr.mxu0 0.0
        %1061 = vmatpush2.msra.mxu0 0.0
        %1062 = vmatprep.subr.mxu0 0.0
        %1063 = vmatpush2.msra.mxu0 0.0
        %1064 = vmatprep.mubr.f32.mxu0 0.0
        %1065 = vmatmul.mubr.f32.gmra.mxu0 %v998
        %v1066 = vpop.f32.mrf.mxu0
        %v1067 = vadd.f32 %v995, %v1066
        %v1068 = vpop.f32.mrf.mxu0
        %v1069 = vadd.f32 %v995, %v1068
        %1070 = vdwg.mxu0
        %1071 = vmatprep.subr.mxu0 0.0
        %1072 = vmatpush1.msra.mxu0 0.0
        %1073 = vmatprep.subr.mxu0 0.0
        %1074 = vmatpush1.msra.mxu0 0.0
        %1075 = vmatprep.subr.mxu0 0.0
        %1076 = vmatpush1.msra.mxu0 0.0
        %1077 = vmatprep.subr.mxu0 0.0
        %1078 = vmatpush1.msra.mxu0 0.0
        %1079 = vmatprep.subr.mxu0 0.0
        %1080 = vmatpush1.msra.mxu0 0.0
        %1081 = vmatprep.subr.mxu0 0.0
        %1082 = vmatpush1.msra.mxu0 0.0
        %1083 = vmatprep.subr.mxu0 0.0
        %1084 = vmatpush1.msra.mxu0 0.0
        %1085 = vmatprep.subr.mxu0 0.0
        %1086 = vmatpush1.msra.mxu0 0.0
        %1087 = vmatprep.subr.mxu0 0.0
        %1088 = vmatpush1.msra.mxu0 0.0
        %1089 = vmatprep.subr.mxu0 0.0
        %1090 = vmatpush1.msra.mxu0 0.0
        %1091 = vmatprep.subr.mxu0 0.0
        %1092 = vmatpush1.msra.mxu0 0.0
        %1093 = vmatprep.subr.mxu0 0.0
        %1094 = vmatpush1.msra.mxu0 0.0
        %1095 = vmatprep.subr.mxu0 %v989
        %1096 = vmatpush1.msra.mxu0 %v988
        %1097 = vmatprep.subr.mxu0 %v985
        %1098 = vmatpush1.msra.mxu0 %v984
        %1099 = vmatprep.subr.mxu0 %v981
        %1100 = vmatpush1.msra.mxu0 %v980
        %1101 = vmatprep.subr.mxu0 %v977
        %1102 = vmatpush1.msra.mxu0 %v976
        %1103 = vmatprep.subr.mxu0 0.0
        %1104 = vmatpush2.msra.mxu0 0.0
        %1105 = vmatprep.subr.mxu0 0.0
        %1106 = vmatpush2.msra.mxu0 0.0
        %1107 = vmatprep.subr.mxu0 0.0
        %1108 = vmatpush2.msra.mxu0 0.0
        %1109 = vmatprep.subr.mxu0 0.0
        %1110 = vmatpush2.msra.mxu0 0.0
        %1111 = vmatprep.subr.mxu0 0.0
        %1112 = vmatpush2.msra.mxu0 0.0
        %1113 = vmatprep.subr.mxu0 0.0
        %1114 = vmatpush2.msra.mxu0 0.0
        %1115 = vmatprep.subr.mxu0 0.0
        %1116 = vmatpush2.msra.mxu0 0.0
        %1117 = vmatprep.subr.mxu0 0.0
        %1118 = vmatpush2.msra.mxu0 0.0
        %1119 = vmatprep.subr.mxu0 0.0
        %1120 = vmatpush2.msra.mxu0 0.0
        %1121 = vmatprep.subr.mxu0 0.0
        %1122 = vmatpush2.msra.mxu0 0.0
        %1123 = vmatprep.subr.mxu0 0.0
        %1124 = vmatpush2.msra.mxu0 0.0
        %1125 = vmatprep.subr.mxu0 0.0
        %1126 = vmatpush2.msra.mxu0 0.0
        %1127 = vmatprep.subr.mxu0 0.0
        %1128 = vmatpush2.msra.mxu0 0.0
        %1129 = vmatprep.subr.mxu0 0.0
        %1130 = vmatpush2.msra.mxu0 0.0
        %1131 = vmatprep.subr.mxu0 0.0
        %1132 = vmatpush2.msra.mxu0 0.0
        %1133 = vmatprep.subr.mxu0 0.0
        %1134 = vmatpush2.msra.mxu0 0.0
        %1135 = vmatprep.mubr.f32.mxu0 0.0
        %1136 = vmatmul.mubr.f32.gmra.mxu0 %v998
        %v1137 = vpop.f32.mrf.mxu0
        %v1138 = vadd.f32 %v995, %v1137
        %v1139 = vpop.f32.mrf.mxu0
        %v1140 = vadd.f32 %v995, %v1139
        %1141 = vdwg.mxu0
        %v1142 = vmul.f32 %v280, %v1067
        %v1143 = vmul.f32 %v281, %v1069
        %v1144 = vmul.f32 %v282, %v1138
        %v1145 = vmul.f32 %v283, %v1140
        %v1146 = vrot.slane %v1142, 4
        %v1147 = vadd.f32 %v1142, %v1146
        %v1148 = vrot.slane %v1147, 2
        %v1149 = vadd.f32 %v1147, %v1148
        %v1150 = vrot.slane %v1149, 1
        %v1151 = vadd.f32 %v1149, %v1150
        %v1152 = vrot.slane %v1143, 4
        %v1153 = vadd.f32 %v1143, %v1152
        %v1154 = vrot.slane %v1153, 2
        %v1155 = vadd.f32 %v1153, %v1154
        %v1156 = vrot.slane %v1155, 1
        %v1157 = vadd.f32 %v1155, %v1156
        %v1158 = vrot.slane %v1144, 4
        %v1159 = vadd.f32 %v1144, %v1158
        %v1160 = vrot.slane %v1159, 2
        %v1161 = vadd.f32 %v1159, %v1160
        %v1162 = vrot.slane %v1161, 1
        %v1163 = vadd.f32 %v1161, %v1162
        %v1164 = vrot.slane %v1145, 4
        %v1165 = vadd.f32 %v1145, %v1164
        %v1166 = vrot.slane %v1165, 2
        %v1167 = vadd.f32 %v1165, %v1166
        %v1168 = vrot.slane %v1167, 1
        %v1169 = vadd.f32 %v1167, %v1168
        %v1170 = vmul.f32 %v1151, %v280
        %v1171 = vmul.f32 %v1157, %v281
        %v1172 = vmul.f32 %v1163, %v282
        %v1173 = vmul.f32 %v1169, %v283
        %v1174 = vsub.f32 %v1067, %v1170
        %v1175 = vsub.f32 %v1069, %v1171
        %v1176 = vsub.f32 %v1138, %v1172
        %v1177 = vsub.f32 %v1140, %v1173
        %1178 = vst [vmem:[%s272] sm:$0xff] %v1174
        %1179 = vst [vmem:[%s272 + $0x8] sm:$0xff] %v1175
        %1180 = vst [vmem:[%s272 + $0x10] sm:$0xff] %v1176
        %1181 = vst [vmem:[%s272 + $0x18] sm:$0xff] %v1177
        %s1182 = sand.u32 %s181, 1
        %s1183 = scalar_lea.sflag [#allocation3], %s1182
        %s1184 = sand.u32 %s181, 1
        %s1185 = smul.addr %s1184, 32
        %s1186 = scalar_lea.vmem [#allocation2], %s1185
        // Predicated region
        $region49: #{tpu_custom_call.1} parent=47 // pred_check
          %p1187 = pneg %p191
        $region50: #{tpu_custom_call.1} parent=47 // pred_check_branch
          %1189 = sbr.rel (%p1187) target = $region52
        $region51: #{tpu_custom_call.1} parent=47 // pred_region
          %s1190 = smul.u32 4, %s21
          %s1192 = ssub.s32 512, 512
          %1193 = vsyncadd %s1183, %s1192
          %s1194 = smul.addr %s1190, 128
          %s1195 = scalar_lea.hbm %s7, %s1194
          %s1197 = sshll.u32 %s1186, 4
          %s1198 = int_to_ptr.vmem [resolvable:$true] %s1197
          %1200 = dma.vmem_to_hbm [thread:$0]  %s1198, 512, %s1195, %s1183
        $region52: #{tpu_custom_call.1} parent=47 // pred_fallthru
          _
      $region48: #{tpu_custom_call.1} parent=5 // pred_fallthru
        _
      %p1201 = scmp.le.s32.totalorder 2, %s16
      // Predicated region
      $region53: #{tpu_custom_call.1} parent=5 // pred_check
        %p1202 = pneg %p1201
      $region54: #{tpu_custom_call.1} parent=5 // pred_check_branch
        %1204 = sbr.rel (%p1202) target = $region56
      $region55: #{tpu_custom_call.1} parent=5 // pred_region
        %s1205 = ssub.s32 %s16, 2
        // Predicated region
        $region57: #{tpu_custom_call.1} parent=55 // pred_check
          %p1206 = pneg %p197
        $region58: #{tpu_custom_call.1} parent=55 // pred_check_branch
          %1208 = sbr.rel (%p1206) target = $region60
        $region59: #{tpu_custom_call.1} parent=55 // pred_region
          %s1209 = sand.u32 %s182, 1
          %s1210 = scalar_lea.sflag [#allocation3], %s1209
          %s1211 = sand.u32 %s182, 1
          %s1212 = smul.addr %s1211, 32
          %s1213 = scalar_lea.vmem [#allocation2], %s1212
          %1214 = dma.done %s1210, 512
        $region60: #{tpu_custom_call.1} parent=55 // pred_fallthru
          _
      $region56: #{tpu_custom_call.1} parent=5 // pred_fallthru
        _
    $region6: #{tpu_custom_call.1} parent=1 // loop_footer
      %s20 = sadd.s32 1, %s16
    $region7: #{tpu_custom_call.1} parent=1 // loop_footer_branch
      %15 = sbr.rel target = $region3
    $region8: #{tpu_custom_call.1} parent=1 // loop_exit
      _
    %1215 = vsyncpa [#allocation3], 1
    %s1216 = scalar_lea.sflag [#allocation3], 1
    %1217 = vsyncpa %s1216, 1

</llo_original>
